<compile_context>
chip_gen: v6e
topology: v6e:2x2x1
jax: 0.10.0
libtpu: 0.0.40
codegen_flags: <defaults>
</compile_context>

<pallas_src>
import functools

import jax
import jax.numpy as jnp
from jax.experimental import pallas as pl
from jax.experimental.pallas import tpu as pltpu


def _ce_kernel(x_ref, t_ref, loss_ref, acc_ref, *, ignore_index, total_pix,
               tile_pix, tiles_per_split, need_mask):
    p = pl.program_id(2)

    @pl.when(p == 0)
    def _():
        acc_ref[...] = jnp.zeros_like(acc_ref)

    x = x_ref[...].astype(jnp.float32)      # (C, TILE_PIX): classes on sublanes
    t = t_ref[...]                          # (1, TILE_PIX) int32

    valid = t != ignore_index               # (1, TILE_PIX)
    if need_mask:
        # Mask ragged-tail columns and phantom (clamped) tiles past H*W.
        g = pl.program_id(1) * tiles_per_split + p     # global pixel-tile index
        pix = g * tile_pix + jax.lax.broadcasted_iota(jnp.int32, t.shape, 1)
        valid = valid & (pix < total_pix)

    # numerically stable logsumexp over the class (sublane) axis
    m = jnp.max(x, axis=0, keepdims=True)                               # (1, TP)
    lse = m + jnp.log(jnp.sum(jnp.exp(x - m), axis=0, keepdims=True))   # (1, TP)

    # logit at the target class via one-hot select + class-axis reduce
    cls = jax.lax.broadcasted_iota(jnp.int32, x.shape, 0)               # (C, TP)
    x_tgt = jnp.sum(jnp.where(cls == t, x, 0.0), axis=0, keepdims=True)

    # single cross-lane reduce per step into a one-vreg accumulator
    acc_ref[...] += jnp.sum(jnp.where(valid, lse - x_tgt, 0.0))

    @pl.when(p == pl.num_programs(2) - 1)
    def _():
        loss_ref[...] = acc_ref[...]        # (1, 128), all lanes hold the sum


def cross_entropy_loss(logits_nchw, target_nhw, ignore_index=-100,
                       tile_pix_override=None):
    """Mean cross-entropy over non-ignored pixels (matches torch)."""
    N, C, H, W = logits_nchw.shape
    P = H * W

    # Free reshapes only — keep the native NCHW memory layout.
    x = logits_nchw.reshape(N, C, P)
    t = target_nhw.astype(jnp.int32).reshape(N, 1, P)

    # --- Real per-pixel VMEM cost (bytes) --------------------------------
    itemsize = jnp.dtype(logits_nchw.dtype).itemsize
    sub = (8 * 4) // itemsize                       # sublane multiple: 8 f32 / 16 bf16
    c_pad_native = ((C + sub - 1) // sub) * sub
    c_pad_f32 = ((C + 7) // 8) * 8
    #   logits: double-buffered sublane-padded native blocks
    #   target: int32 (1, tile) padded to 8 sublanes -> 32 B/pixel/buffer, x2
    #   temporaries: ~4 block-sized f32 arrays (upcast, exp, one-hot, iota)
    bytes_per_pix = 2 * c_pad_native * itemsize + 2 * 32 + 4 * c_pad_f32 * 4

    # --- Generation-aware VMEM budget ------------------------------------
    try:
        vmem_cap = int(getattr(pltpu.get_tpu_info(), "vmem_capacity_bytes",
                               64 << 20))
    except Exception:
        vmem_cap = 64 << 20                         # v7x per-core size = safe floor
    budget = min(vmem_cap // 2, 48 << 20)
    vmem_limit = int(min(max(vmem_cap - (16 << 20), 32 << 20), 100 << 20))

    if tile_pix_override is not None:
        desired = max(128, (tile_pix_override // 128) * 128)
    else:
        desired = max(512, (budget // bytes_per_pix) // 128 * 128)
    tile_pix = P if P <= desired else desired
    num_tiles = pl.cdiv(P, tile_pix)

    # Megacore: if the batch axis alone can't keep 2 TensorCores busy,
    # split the pixel-tile range into 2 parallel groups of T tiles each.
    S = 2 if (num_tiles >= 2 and N % 2 == 1) else 1
    T = pl.cdiv(num_tiles, S)
    need_mask = (S * T * tile_pix) != P

    last_blk = num_tiles - 1
    if S * T > num_tiles:
        # Phantom trailing tiles in the last split: clamp the DMA in-bounds;
        # the in-kernel `pix < total_pix` mask zeroes their contribution.
        def in_map(n, s, p):
            return (n, 0, jnp.minimum(s * T + p, last_blk))
    else:
        def in_map(n, s, p):
            return (n, 0, s * T + p)

    kernel = functools.partial(
        _ce_kernel, ignore_index=ignore_index, total_pix=P,
        tile_pix=tile_pix, tiles_per_split=T, need_mask=need_mask)

    loss_parts = pl.pallas_call(
        kernel,
        out_shape=jax.ShapeDtypeStruct((N, S, 1, 128), jnp.float32),
        grid_spec=pltpu.PrefetchScalarGridSpec(
            num_scalar_prefetch=0,
            grid=(N, S, T),
            in_specs=[
                pl.BlockSpec((None, C, tile_pix), in_map),
                pl.BlockSpec((None, 1, tile_pix), in_map),
            ],
            out_specs=pl.BlockSpec((None, None, 1, 128),
                                   lambda n, s, p: (n, s, 0, 0)),
            scratch_shapes=[pltpu.VMEM((1, 128), jnp.float32)],
        ),
        compiler_params=pltpu.CompilerParams(
            # (batch, pixel-split) parallel -> both TensorCores busy on v7x
            # even for N == 1; pixel-tile axis is the sequential reduction.
            dimension_semantics=("parallel", "parallel", "arbitrary"),
            vmem_limit_bytes=vmem_limit,
        ),
    )(x, t)

    loss_sum = jnp.sum(loss_parts[:, :, 0, 0])
    # num_valid via plain XLA (targets are tiny vs. logits traffic)
    num_valid = jnp.sum((target_nhw != ignore_index).astype(jnp.float32))
    # mean over non-ignored pixels (NaN if every pixel is ignored, like torch)
    return loss_sum / num_valid


def _ref_ce(logits, target, ignore_index=-100):
    N, C, H, W = logits.shape
    x = jnp.transpose(logits, (0, 2, 3, 1)).reshape(-1, C).astype(jnp.float32)
    tt = target.reshape(-1)
    valid = tt != ignore_index
    lse = jax.scipy.special.logsumexp(x, axis=-1)
    picked = x[jnp.arange(x.shape[0]), jnp.where(valid, tt, 0)]
    return jnp.sum(jnp.where(valid, lse - picked, 0.0)) / jnp.sum(valid)


if __name__ == "__main__":
    key = jax.random.PRNGKey(0)

    # --- Test 1: basic f32, single pixel tile ---------------------------
    k1, k2, k3, k4, k5, k6 = jax.random.split(key, 6)
    N, C, H, W = 2, 4, 16, 16
    logits = jax.random.normal(k1, (N, C, H, W), dtype=jnp.float32)
    target = jax.random.randint(k2, (N, H, W), 0, C, dtype=jnp.int32)
    target = target.at[0, 0, :4].set(-100)           # exercise ignore_index
    loss = jax.block_until_ready(cross_entropy_loss(logits, target))
    ref = _ref_ce(logits, target)
    assert jnp.allclose(loss, ref, rtol=1e-5, atol=1e-5), (loss, ref)

    # --- Test 2: multi-tile + ragged tail + megacore pixel split --------
    N2, C2, H2, W2 = 1, 4, 24, 24                     # P = 576
    logits2 = jax.random.normal(k3, (N2, C2, H2, W2), dtype=jnp.float32)
    target2 = jax.random.randint(k4, (N2, H2, W2), 0, C2, dtype=jnp.int32)
    target2 = target2.at[0, 5, :7].set(-100)
    loss2 = jax.block_until_ready(
        cross_entropy_loss(logits2, target2, tile_pix_override=256))
    ref2 = _ref_ce(logits2, target2)
    assert jnp.allclose(loss2, ref2, rtol=1e-5, atol=1e-5), (loss2, ref2)

    # --- Test 3: bf16 logits (kept bf16 in HBM, upcast in-kernel) -------
    N3, C3, H3, W3 = 2, 6, 16, 16
    logits3 = jax.random.normal(k5, (N3, C3, H3, W3),
                                dtype=jnp.float32).astype(jnp.bfloat16)
    target3 = jax.random.randint(k6, (N3, H3, W3), 0, C3, dtype=jnp.int32)
    loss3 = jax.block_until_ready(cross_entropy_loss(logits3, target3))
    ref3 = _ref_ce(logits3.astype(jnp.float32), target3)
    assert jnp.allclose(loss3, ref3, rtol=1e-4, atol=1e-4), (loss3, ref3)

    print("KERNEL_OK")
</pallas_src>

<mosaic_0001>
module attributes {stable_mosaic.version = 11 : i64} {
  func.func @_ce_kernel(%arg0: i32, %arg1: i32, %arg2: i32, %arg3: memref<1x4x256xf32, #tpu.memory_space<vmem>>, %arg4: memref<1x1x256xi32, #tpu.memory_space<vmem>>, %arg5: memref<1x1x1x128xf32, #tpu.memory_space<vmem>>, %arg6: memref<1x128xf32, #tpu.memory_space<vmem>>) attributes {dimension_semantics = [#tpu.dimension_semantics<parallel>, #tpu.dimension_semantics<parallel>, #tpu.dimension_semantics<arbitrary>], iteration_bounds = array<i64: 2, 1, 1>, scalar_prefetch = 0 : i64, scratch_operands = 1 : i64, tpu.core_type = #tpu.core_type<tc>, window_params = [{transform_indices = @transform_0, window_bounds = array<i64: 1, 4, 256>}, {transform_indices = @transform_1, window_bounds = array<i64: 1, 1, 256>}, {transform_indices = @transform_2, window_bounds = array<i64: 1, 1, 1, 128>}]} {
    %c0_i32 = arith.constant 0 : i32
    %0 = arith.cmpi eq, %arg2, %c0_i32 : i32
    %1 = arith.extui %0 : i1 to i32
    %c0_i32_0 = arith.constant 0 : i32
    %2 = arith.cmpi ne, %1, %c0_i32_0 : i32
    scf.if %2 {
      %cst_17 = arith.constant 0.000000e+00 : f32
      %39 = vector.broadcast %cst_17 : f32 to vector<1x128xf32>
      %c0_18 = arith.constant 0 : index
      %c0_19 = arith.constant 0 : index
      %40 = vector.load %arg6[%c0_18, %c0_19] : memref<1x128xf32, #tpu.memory_space<vmem>>, vector<1x128xf32>
      tpu.vector_store %arg6[%c0_18, %c0_19], %39 {strides = array<i32>} : memref<1x128xf32, #tpu.memory_space<vmem>>, vector<1x128xf32>,
    } else {
    }
    %c0 = arith.constant 0 : index
    %c0_1 = arith.constant 0 : index
    %c0_2 = arith.constant 0 : index
    %3 = vector.load %arg3[%c0, %c0_1, %c0_2] : memref<1x4x256xf32, #tpu.memory_space<vmem>>, vector<1x4x256xf32>
    %4 = vector.shape_cast %3 : vector<1x4x256xf32> to vector<4x256xf32>
    %c0_3 = arith.constant 0 : index
    %c0_4 = arith.constant 0 : index
    %c0_5 = arith.constant 0 : index
    %5 = vector.load %arg4[%c0_3, %c0_4, %c0_5] : memref<1x1x256xi32, #tpu.memory_space<vmem>>, vector<1x1x256xi32>
    %6 = vector.shape_cast %5 : vector<1x1x256xi32> to vector<1x256xi32>
    %c-100_i32 = arith.constant -100 : i32
    %7 = vector.broadcast %c-100_i32 : i32 to vector<1x256xi32>
    %8 = arith.cmpi ne, %6, %7 : vector<1x256xi32>
    %cst = arith.constant dense<0xFF800000> : vector<256xf32>
    %9 = vector.multi_reduction <maximumf>, %4, %cst [0] : vector<4x256xf32> to vector<256xf32>
    %10 = vector.shape_cast %9 : vector<256xf32> to vector<1x256xf32>
    %11 = vector.broadcast %10 : vector<1x256xf32> to vector<4x256xf32>
    %12 = arith.subf %4, %11 : vector<4x256xf32>
    %13 = math.exp %12 : vector<4x256xf32>
    %cst_6 = arith.constant dense<0.000000e+00> : vector<256xf32>
    %14 = vector.multi_reduction <add>, %13, %cst_6 [0] : vector<4x256xf32> to vector<256xf32>
    %15 = vector.shape_cast %14 : vector<256xf32> to vector<1x256xf32>
    %16 = math.log %15 : vector<1x256xf32>
    %17 = arith.addf %10, %16 : vector<1x256xf32>
    %18 = tpu.iota {dimensions = array<i32: 0>} : vector<4x256xi32>
    %19 = vector.broadcast %6 : vector<1x256xi32> to vector<4x256xi32>
    %20 = arith.cmpi eq, %18, %19 : vector<4x256xi32>
    %cst_7 = arith.constant 0.000000e+00 : f32
    %21 = vector.broadcast %cst_7 : f32 to vector<4x256xf32>
    %22 = arith.select %20, %4, %21 : vector<4x256xi1>, vector<4x256xf32>
    %cst_8 = arith.constant dense<0.000000e+00> : vector<256xf32>
    %23 = vector.multi_reduction <add>, %22, %cst_8 [0] : vector<4x256xf32> to vector<256xf32>
    %24 = vector.shape_cast %23 : vector<256xf32> to vector<1x256xf32>
    %c0_9 = arith.constant 0 : index
    %c0_10 = arith.constant 0 : index
    %25 = vector.load %arg6[%c0_9, %c0_10] : memref<1x128xf32, #tpu.memory_space<vmem>>, vector<1x128xf32>
    %26 = arith.subf %17, %24 : vector<1x256xf32>
    %cst_11 = arith.constant 0.000000e+00 : f32
    %27 = vector.broadcast %cst_11 : f32 to vector<1x256xf32>
    %28 = arith.select %8, %26, %27 : vector<1x256xi1>, vector<1x256xf32>
    %29 = vector.shape_cast %28 : vector<1x256xf32> to vector<1x1x256xf32>
    %cst_12 = arith.constant dense<0.000000e+00> : vector<1xf32>
    %30 = vector.multi_reduction <add>, %29, %cst_12 [1, 2] : vector<1x1x256xf32> to vector<1xf32>
    %31 = vector.shape_cast %30 : vector<1xf32> to vector<1x1x1xf32>
    %32 = vector.extract %31[0, 0, 0] : f32 from vector<1x1x1xf32>
    %33 = vector.broadcast %32 : f32 to vector<1x128xf32>
    %34 = arith.addf %25, %33 : vector<1x128xf32>
    %c0_13 = arith.constant 0 : index
    %c0_14 = arith.constant 0 : index
    %35 = vector.load %arg6[%c0_13, %c0_14] : memref<1x128xf32, #tpu.memory_space<vmem>>, vector<1x128xf32>
    tpu.vector_store %arg6[%c0_13, %c0_14], %34 {strides = array<i32>} : memref<1x128xf32, #tpu.memory_space<vmem>>, vector<1x128xf32>,
    %c0_i32_15 = arith.constant 0 : i32
    %36 = arith.cmpi eq, %arg2, %c0_i32_15 : i32
    %37 = arith.extui %36 : i1 to i32
    %c0_i32_16 = arith.constant 0 : i32
    %38 = arith.cmpi ne, %37, %c0_i32_16 : i32
    scf.if %38 {
      %c0_17 = arith.constant 0 : index
      %c0_18 = arith.constant 0 : index
      %39 = vector.load %arg6[%c0_17, %c0_18] : memref<1x128xf32, #tpu.memory_space<vmem>>, vector<1x128xf32>
      %c0_19 = arith.constant 0 : index
      %c0_20 = arith.constant 0 : index
      %c0_21 = arith.constant 0 : index
      %c0_22 = arith.constant 0 : index
      %40 = vector.load %arg5[%c0_19, %c0_20, %c0_21, %c0_22] : memref<1x1x1x128xf32, #tpu.memory_space<vmem>>, vector<1x1x1x128xf32>
      %41 = vector.shape_cast %40 : vector<1x1x1x128xf32> to vector<1x128xf32>
      %42 = vector.shape_cast %39 : vector<1x128xf32> to vector<1x1x1x128xf32>
      tpu.vector_store %arg5[%c0_19, %c0_20, %c0_21, %c0_22], %42 {strides = array<i32>} : memref<1x1x1x128xf32, #tpu.memory_space<vmem>>, vector<1x1x1x128xf32>,
    } else {
    }
    return
  }
  func.func @transform_0(%arg0: i32, %arg1: i32, %arg2: i32) -> (i32, i32, i32) {
    %c1_i32 = arith.constant 1 : i32
    %0 = arith.muli %arg1, %c1_i32 : i32
    %1 = arith.addi %0, %arg2 : i32
    %c0_i32 = arith.constant 0 : i32
    %c0_i32_0 = arith.constant 0 : i32
    return %arg0, %c0_i32, %1 : i32, i32, i32
  }
  func.func @transform_1(%arg0: i32, %arg1: i32, %arg2: i32) -> (i32, i32, i32) {
    %c1_i32 = arith.constant 1 : i32
    %0 = arith.muli %arg1, %c1_i32 : i32
    %1 = arith.addi %0, %arg2 : i32
    %c0_i32 = arith.constant 0 : i32
    %c0_i32_0 = arith.constant 0 : i32
    return %arg0, %c0_i32, %1 : i32, i32, i32
  }
  func.func @transform_2(%arg0: i32, %arg1: i32, %arg2: i32) -> (i32, i32, i32, i32) {
    %c0_i32 = arith.constant 0 : i32
    %c0_i32_0 = arith.constant 0 : i32
    %c0_i32_1 = arith.constant 0 : i32
    return %arg0, %arg1, %c0_i32, %c0_i32_0 : i32, i32, i32, i32
  }
}

</mosaic_0001>

<llo_original>
// kernel: tpu_custom_call.1
$region0: #{tpu_custom_call.1}
  #allocation0 [shape = 'u32[]', space=smem, size = 0x4, offset = 0x4, fixed_abs, tag = 'smem constant byte address 0x4 - core index']
  #allocation1 [shape = 'u32[144,128]{1,0:T(1,128)}', space=vmem, size = 0x12000, scoped, tag = 'internal scratch']
  #allocation2 [shape = 'f32[1,128]{1,0:T(1,128)}', space=vmem, size = 0x200, scoped, tag = 'scratch operand']
  %s0 = inlined_call_operand.hbm [shape: f32[2,4,256], index: 0, kind: input, shape index: {}]
  %s1 = inlined_call_operand.hbm [shape: s32[2,1,256], index: 1, kind: input, shape index: {}]
  %s2 = inlined_call_operand.hbm [shape: f32[2,1,1,128], index: 2, kind: output, shape index: {}]
  %s3 = sld [smem:[#allocation0]]
  $region57: #{tpu_custom_call.1} parent=0
    _
  %s5 = ssub.s32 1, %s3
  %s6 = scalar_select 0, %s5, %s3
  $region1: #{tpu_custom_call.1} parent=0
    #allocation3 [shape = 'u8[8192]{0}', space=vmem, size = 0x2000, scoped, tag = 'input window, operand 0']
    #allocation4 [shape = 's32[2]{0}', space=sflag, size = 0x8, scoped, tag = 'scoped memory for tpu_custom_call.1']
    #allocation5 [shape = 's32[2]{0}', space=sflag, size = 0x8, scoped, tag = 'scoped memory for tpu_custom_call.1']
    #allocation6 [shape = 'u8[2048]{0}', space=vmem, size = 0x800, scoped, tag = 'input window, operand 1']
    #allocation7 [shape = 's32[2]{0}', space=sflag, size = 0x8, scoped, tag = 'scoped memory for tpu_custom_call.1']
    #allocation8 [shape = 'u8[1024]{0}', space=vmem, size = 0x400, scoped, tag = 'output window, operand 0']
    %7 = vsyncpa [#allocation4], 0
    %s8 = scalar_lea.sflag [#allocation4], 1
    %9 = vsyncpa %s8, 0
    %10 = vsyncpa [#allocation7], 0
    %s11 = scalar_lea.sflag [#allocation7], 1
    %12 = vsyncpa %s11, 0
    %13 = vsyncpa [#allocation5], 0
    %s14 = scalar_lea.sflag [#allocation5], 1
    %15 = vsyncpa %s14, 0
    loop: start=0, step=1, limit=4
    $region2: #{tpu_custom_call.1} parent=1 // loop_pre_header
      _
    $region3: #{tpu_custom_call.1} parent=1 // loop_header
      %s17 = sphi 0, %s21
      %p18 = scmp.ge.s32.totalorder %s17, 4
      %s24 = sphi 0, %s43
      %s25 = sphi 0, %s39
      %s26 = sphi 0, %s35
      %s27 = sphi 0, %s24
      %s28 = sphi 0, %s25
      %s29 = sphi 0, %s26
      %s30 = sphi 0, %s27
      %s31 = sphi 0, %s28
      %s32 = sphi 0, %s29
      %s50 = sphi 0, %s52
      %s53 = sphi 0, %s50
      %s54 = sphi 0, %s53
      %s70 = sphi 0, %s54
      %s80 = sphi 0, %s82
      %s83 = sphi 0, %s80
      %s84 = sphi 0, %s83
      %s100 = sphi 0, %s84
      %s108 = sphi 0, %s110
      %s111 = sphi 0, %s108
      %s112 = sphi 0, %s111
      %s128 = sphi 0, %s112
    $region4: #{tpu_custom_call.1} parent=1 // loop_header_branch
      %20 = sbr.rel (%p18) target = $region8
    $region5: #{tpu_custom_call.1} parent=1 // loop_body
      %s22 = ssub.s32 %s17, 1
      %s23 = ssub.s32 %s17, 2
      %s33 = sadd.s32 1, %s26
      %p34 = scmp.ge.s32.totalorder %s33, 1
      %s35 = scalar_select %p34, 0, %s33
      %s36 = sadd.s32 1, %s25
      %s37 = scalar_select %p34, %s36, %s25
      %p38 = scmp.ge.s32.totalorder %s37, 1
      %s39 = scalar_select %p38, 0, %s37
      %s40 = sadd.s32 1, %s24
      %s41 = scalar_select %p38, %s40, %s24
      %p42 = scmp.ge.s32.totalorder %s41, 2
      %s43 = scalar_select %p42, 0, %s41
      %s44 = sadd.s32 %s25, %s26
      %s45 = sadd.s32 %s39, %s35
      %s46 = ssub.s32 %s24, %s43
      %s47 = ssub.s32 %s44, %s45
      %s48 = sor.u32 %s46, %s47
      %p49 = scmp.eq.s32.totalorder %s48, 0
      %s51 = sadd.s32 %s50, 1
      %s52 = scalar_select %p49, %s50, %s51
      %p55 = pneg %p49
      %p56 = scmp.eq.s32.totalorder %s17, 1
      %p57 = por %p55, %p56
      %p58 = scmp.ne.s32.totalorder %s50, %s53
      %p59 = scmp.eq.s32.totalorder %s17, 0
      %p60 = por %p58, %p59
      %p61 = scmp.ne.s32.totalorder %s50, %s53
      %p62 = scmp.eq.s32.totalorder %s22, 1
      %p63 = por %p61, %p62
      %p64 = scmp.ne.s32.totalorder %s53, %s54
      %p65 = scmp.eq.s32.totalorder %s22, 0
      %p66 = por %p64, %p65
      %p67 = scmp.ne.s32.totalorder %s53, %s54
      %p68 = scmp.eq.s32.totalorder %s23, 1
      %p69 = por %p67, %p68
      %p71 = scmp.ne.s32.totalorder %s54, %s70
      %p72 = scmp.eq.s32.totalorder %s23, 0
      %p73 = por %p71, %p72
      %s74 = sadd.s32 %s25, %s26
      %s75 = sadd.s32 %s39, %s35
      %s76 = ssub.s32 %s24, %s43
      %s77 = ssub.s32 %s74, %s75
      %s78 = sor.u32 %s76, %s77
      %p79 = scmp.eq.s32.totalorder %s78, 0
      %s81 = sadd.s32 %s80, 1
      %s82 = scalar_select %p79, %s80, %s81
      %p85 = pneg %p79
      %p86 = scmp.eq.s32.totalorder %s17, 1
      %p87 = por %p85, %p86
      %p88 = scmp.ne.s32.totalorder %s80, %s83
      %p89 = scmp.eq.s32.totalorder %s17, 0
      %p90 = por %p88, %p89
      %p91 = scmp.ne.s32.totalorder %s80, %s83
      %p92 = scmp.eq.s32.totalorder %s22, 1
      %p93 = por %p91, %p92
      %p94 = scmp.ne.s32.totalorder %s83, %s84
      %p95 = scmp.eq.s32.totalorder %s22, 0
      %p96 = por %p94, %p95
      %p97 = scmp.ne.s32.totalorder %s83, %s84
      %p98 = scmp.eq.s32.totalorder %s23, 1
      %p99 = por %p97, %p98
      %p101 = scmp.ne.s32.totalorder %s84, %s100
      %p102 = scmp.eq.s32.totalorder %s23, 0
      %p103 = por %p101, %p102
      %s104 = ssub.s32 %s24, %s43
      %s105 = ssub.s32 %s25, %s39
      %s106 = sor.u32 %s104, %s105
      %p107 = scmp.eq.s32.totalorder %s106, 0
      %s109 = sadd.s32 %s108, 1
      %s110 = scalar_select %p107, %s108, %s109
      %p113 = pneg %p107
      %p114 = scmp.eq.s32.totalorder %s17, 1
      %p115 = por %p113, %p114
      %p116 = scmp.ne.s32.totalorder %s108, %s111
      %p117 = scmp.eq.s32.totalorder %s17, 0
      %p118 = por %p116, %p117
      %p119 = scmp.ne.s32.totalorder %s108, %s111
      %p120 = scmp.eq.s32.totalorder %s22, 1
      %p121 = por %p119, %p120
      %p122 = scmp.ne.s32.totalorder %s111, %s112
      %p123 = scmp.eq.s32.totalorder %s22, 0
      %p124 = por %p122, %p123
      %p125 = scmp.ne.s32.totalorder %s111, %s112
      %p126 = scmp.eq.s32.totalorder %s23, 1
      %p127 = por %p125, %p126
      %p129 = scmp.ne.s32.totalorder %s112, %s128
      %p130 = scmp.eq.s32.totalorder %s23, 0
      %p131 = por %p129, %p130
      %p132 = scmp.le.s32.totalorder 1, %s17
      %p133 = scmp.lt.s32.totalorder %s17, 3
      %p134 = pnand %p132, %p133
      %p135 = pneg %p134
      // Predicated region
      $region9: #{tpu_custom_call.1} parent=5 // pred_check
        _
      $region10: #{tpu_custom_call.1} parent=5 // pred_check_branch
        %137 = sbr.rel (%p134) target = $region12
      $region11: #{tpu_custom_call.1} parent=5 // pred_region
        %s138 = ssub.s32 %s17, 1
      $region12: #{tpu_custom_call.1} parent=5 // pred_fallthru
        _
      %p139 = scmp.lt.s32.totalorder %s17, 2
      // Predicated region
      $region13: #{tpu_custom_call.1} parent=5 // pred_check
        %p140 = pneg %p139
      $region14: #{tpu_custom_call.1} parent=5 // pred_check_branch
        %142 = sbr.rel (%p140) target = $region16
      $region15: #{tpu_custom_call.1} parent=5 // pred_region
        // Predicated region
        $region17: #{tpu_custom_call.1} parent=15 // pred_check
          %p143 = pneg %p60
        $region18: #{tpu_custom_call.1} parent=15 // pred_check_branch
          %145 = sbr.rel (%p143) target = $region20
        $region19: #{tpu_custom_call.1} parent=15 // pred_region
          %s146 = sand.u32 %s50, 1
          %s147 = scalar_lea.sflag [#allocation4], %s146
          %s148 = sand.u32 %s50, 1
          %s149 = smul.addr %s148, 8
          %s150 = scalar_lea.vmem [#allocation3], %s149
          %s151 = sadd.s32 %s25, %s26
          %s152 = smul.u32 2, %s151
          %s154 = ssub.s32 128, 128
          %155 = vsyncadd %s147, %s154
          %s156 = smul.addr %s24, 2
          %s157 = sadd.s32 %s152, %s156
          %s158 = smul.addr %s157, 64
          %s159 = scalar_lea.hbm %s0, %s158
          %s161 = sshll.u32 %s150, 4
          %s162 = int_to_ptr.vmem [resolvable:$true] %s161
          %164 = dma.hbm_to_vmem [thread:$0]  %s159, 128, %s162, %s147
        $region20: #{tpu_custom_call.1} parent=15 // pred_fallthru
          _
        // Predicated region
        $region21: #{tpu_custom_call.1} parent=15 // pred_check
          %p165 = pneg %p90
        $region22: #{tpu_custom_call.1} parent=15 // pred_check_branch
          %167 = sbr.rel (%p165) target = $region24
        $region23: #{tpu_custom_call.1} parent=15 // pred_region
          %s168 = sand.u32 %s80, 1
          %s169 = scalar_lea.sflag [#allocation7], %s168
          %s170 = sand.u32 %s80, 1
          %s171 = smul.addr %s170, 2
          %s172 = scalar_lea.vmem [#allocation6], %s171
          %s173 = sadd.s32 %s25, %s26
          %s174 = smul.u32 2, %s173
          %s176 = ssub.s32 32, 32
          %177 = vsyncadd %s169, %s176
          %s178 = smul.addr %s24, 2
          %s179 = sadd.s32 %s174, %s178
          %s180 = smul.addr %s179, 16
          %s181 = scalar_lea.hbm %s1, %s180
          %s183 = sshll.u32 %s172, 4
          %s184 = int_to_ptr.vmem [resolvable:$true] %s183
          %186 = dma.hbm_to_vmem [thread:$0]  %s181, 32, %s184, %s169
        $region24: #{tpu_custom_call.1} parent=15 // pred_fallthru
          _
      $region16: #{tpu_custom_call.1} parent=5 // pred_fallthru
        _
      %p187 = scmp.le.s32.totalorder 1, %s17
      %p188 = scmp.lt.s32.totalorder %s17, 3
      %p189 = pnand %p187, %p188
      %p190 = pneg %p189
      // Predicated region
      $region25: #{tpu_custom_call.1} parent=5 // pred_check
        _
      $region26: #{tpu_custom_call.1} parent=5 // pred_check_branch
        %192 = sbr.rel (%p189) target = $region28
      $region27: #{tpu_custom_call.1} parent=5 // pred_region
        %s193 = ssub.s32 %s17, 1
        %s194 = sand.u32 %s53, 1
        %s195 = scalar_lea.sflag [#allocation4], %s194
        %s196 = sand.u32 %s53, 1
        %s197 = smul.addr %s196, 8
        %s198 = scalar_lea.vmem [#allocation3], %s197
        // Predicated region
        $region29: #{tpu_custom_call.1} parent=27 // pred_check
          %p199 = pneg %p66
        $region30: #{tpu_custom_call.1} parent=27 // pred_check_branch
          %201 = sbr.rel (%p199) target = $region32
        $region31: #{tpu_custom_call.1} parent=27 // pred_region
          %202 = dma.done %s195, 128
        $region32: #{tpu_custom_call.1} parent=27 // pred_fallthru
          _
        %s203 = sand.u32 %s83, 1
        %s204 = scalar_lea.sflag [#allocation7], %s203
        %s205 = sand.u32 %s83, 1
        %s206 = smul.addr %s205, 2
        %s207 = scalar_lea.vmem [#allocation6], %s206
        // Predicated region
        $region33: #{tpu_custom_call.1} parent=27 // pred_check
          %p208 = pneg %p96
        $region34: #{tpu_custom_call.1} parent=27 // pred_check_branch
          %210 = sbr.rel (%p208) target = $region36
        $region35: #{tpu_custom_call.1} parent=27 // pred_region
          %211 = dma.done %s204, 32
        $region36: #{tpu_custom_call.1} parent=27 // pred_fallthru
          _
        %s212 = sand.u32 %s53, 1
        %s213 = scalar_lea.sflag [#allocation4], %s212
        %s214 = sand.u32 %s53, 1
        %s215 = smul.addr %s214, 8
        %s216 = scalar_lea.vmem [#allocation3], %s215
        %p217 = pneg %p66
        %p218 = pneg %p63
        %s219 = sand.u32 %s83, 1
        %s220 = scalar_lea.sflag [#allocation7], %s219
        %s221 = sand.u32 %s83, 1
        %s222 = smul.addr %s221, 2
        %s223 = scalar_lea.vmem [#allocation6], %s222
        %p224 = pneg %p96
        %p225 = pneg %p93
        %p226 = pneg %p124
        %p227 = pneg %p121
        %s228 = sand.u32 %s111, 1
        %s229 = scalar_lea.sflag [#allocation5], %s228
        %s230 = sand.u32 %s111, 1
        %s231 = scalar_lea.vmem [#allocation8], %s230
        %s232 = sadd.s32 %s28, %s29
        %s233 = smul.u32 2, %s232
        %s234 = sadd.s32 %s28, %s29
        %s235 = smul.u32 2, %s234
        %p236 = scmp.eq.s32.totalorder %s29, 0
        // Predicated region
        $region37: #{tpu_custom_call.1} parent=27 // pred_check
          %p237 = pneg %p236
        $region38: #{tpu_custom_call.1} parent=27 // pred_check_branch
          %239 = sbr.rel (%p237) target = $region40
        $region39: #{tpu_custom_call.1} parent=27 // pred_region
          %240 = vst [vmem:[#allocation2] sm:$0x1] 0.0
        $region40: #{tpu_custom_call.1} parent=27 // pred_fallthru
          _
        %v241 = vld [vmem:[%s198] sm:$0xff]
        %v242 = vld [vmem:[%s207] sm:$0x3]
        %vm243 = vcmp.ne.s32.totalorder %v242, 4294967196
        %v245 = vcombine.high %v241, %v241
        %vm247 = vcmask 1043456
        %v248 = vsel %vm247, %v241, -inf
        %v249 = vrot.slane %v248, 4
        %v250 = vmax.f32 %v248, %v249
        %v251 = vrot.slane %v250, 2
        %v252 = vmax.f32 %v250, %v251
        %v253 = vrot.slane %v252, 1
        %v254 = vmax.f32 %v252, %v253
        %v255 = vsel %vm247, %v245, -inf
        %v256 = vrot.slane %v255, 4
        %v257 = vmax.f32 %v255, %v256
        %v258 = vrot.slane %v257, 2
        %v259 = vmax.f32 %v257, %v258
        %v260 = vrot.slane %v259, 1
        %v261 = vmax.f32 %v259, %v260
        %v264 = vcombine.low %v254, %v261
        %v266 = vsub.f32 %v241, %v264
        %v267 = vmul.f32 %v266, 1.442695
        %v268 = vpow.pop %v267
        %v270 = vcombine.high %v268, %v268
        %v272 = vsel %vm247, %v268, 0.0
        %v273 = vrot.slane %v272, 4
        %v274 = vadd.f32 %v272, %v273
        %v275 = vrot.slane %v274, 2
        %v276 = vadd.f32 %v274, %v275
        %v277 = vrot.slane %v276, 1
        %v278 = vadd.f32 %v276, %v277
        %v279 = vsel %vm247, %v270, 0.0
        %v280 = vrot.slane %v279, 4
        %v281 = vadd.f32 %v279, %v280
        %v282 = vrot.slane %v281, 2
        %v283 = vadd.f32 %v281, %v282
        %v284 = vrot.slane %v283, 1
        %v285 = vadd.f32 %v283, %v284
        %v286 = vlog2.pop %v278
        %v287 = vmul.f32 %v286, 0.6931472
        %v288 = vlog2.pop %v285
        %v289 = vmul.f32 %v288, 0.6931472
        %v290 = vadd.f32 %v254, %v287
        %v291 = vadd.f32 %v261, %v289
        %v292 = vlaneseq
        %v293 = vshrl.u32 %v292, 7
        %v294 = vlaneseq
        %v295 = vshrl.u32 %v294, 7
        %v296 = vsub.s32 0, %v295
        %v297 = vrot.slane %v242, %v296
        %v298 = vlaneseq
        %v299 = vshrl.u32 %v298, 7
        %v300 = vsub.s32 1, %v299
        %v301 = vrot.slane %v242, %v300
        %vm302 = vcmp.eq.s32.totalorder %v293, %v297
        %vm303 = vcmp.eq.s32.totalorder %v293, %v301
        %v304 = vsel %vm302, %v241, 0.0
        %v305 = vsel %vm303, %v245, 0.0
        %v306 = vsel %vm247, %v304, 0.0
        %v307 = vrot.slane %v306, 4
        %v308 = vadd.f32 %v306, %v307
        %v309 = vrot.slane %v308, 2
        %v310 = vadd.f32 %v308, %v309
        %v311 = vrot.slane %v310, 1
        %v312 = vadd.f32 %v310, %v311
        %v313 = vsel %vm247, %v305, 0.0
        %v314 = vrot.slane %v313, 4
        %v315 = vadd.f32 %v313, %v314
        %v316 = vrot.slane %v315, 2
        %v317 = vadd.f32 %v315, %v316
        %v318 = vrot.slane %v317, 1
        %v319 = vadd.f32 %v317, %v318
        %v320 = vld [vmem:[#allocation2] sm:$0x1]
        %v321 = vsub.f32 %v290, %v312
        %v322 = vsub.f32 %v291, %v319
        %v325 = vcombine.low %v321, %v322
        %v327 = vunpack.c.l.s4 1966171168
        %v328 = vunpack.c.0.s8 %v327
        %v329 = vlaneseq
        %v330 = vshrl.u32 %v329, 7
        %v331 = vsub.s32 %v328, %v330
        %v332 = vrot.slane %v325, %v331
        %v334 = vunpack.c.l.s4 1966171168
        %v335 = vunpack.c.0.s8 %v334
        %v336 = vlaneseq
        %v337 = vshrl.u32 %v336, 7
        %v338 = vsub.s32 %v335, %v337
        %v339 = vrot.slane %v332, %v338
        %v341 = vsel %vm243, %v339, 0.0
        %v343 = vlaneseq
        %v344 = vshrl.u32 %v343, 7
        %v345 = vsub.s32 0, %v344
        %v346 = vrot.slane %v341, %v345
        %v347 = vlaneseq
        %v348 = vshrl.u32 %v347, 7
        %v349 = vsub.s32 1, %v348
        %v350 = vrot.slane %v341, %v349
        %vm353 = vcmask 1040384
        %v354 = vsel %vm353, %v346, 0.0
        %v355 = vsel %vm353, %v350, 0.0
        %v356 = vadd.f32 %v354, %v355
        %357 = vadd.xlane.f32.xlu0 %v356
        %v358 = vpop.xlane.xlu0 %357
        %v359 = vrot.slane %v358, 4
        %v360 = vadd.f32 %v358, %v359
        %v361 = vrot.slane %v360, 2
        %v362 = vadd.f32 %v360, %v361
        %v363 = vrot.slane %v362, 1
        %v364 = vadd.f32 %v362, %v363
        %s365 = vtos %v364
        %v366 = vstv %s365
        %v367 = vadd.f32 %v320, %v366
        %368 = vst [vmem:[#allocation2] sm:$0x1] %v367
        // Predicated region
        $region41: #{tpu_custom_call.1} parent=27 // pred_check
          %p369 = pneg %p236
        $region42: #{tpu_custom_call.1} parent=27 // pred_check_branch
          %371 = sbr.rel (%p369) target = $region44
        $region43: #{tpu_custom_call.1} parent=27 // pred_region
          %v372 = vld [vmem:[#allocation2] sm:$0x1]
          %373 = vst [vmem:[%s231] sm:$0x1] %v372
        $region44: #{tpu_custom_call.1} parent=27 // pred_fallthru
          _
        %s374 = sand.u32 %s111, 1
        %s375 = scalar_lea.sflag [#allocation5], %s374
        %s376 = sand.u32 %s111, 1
        %s377 = scalar_lea.vmem [#allocation8], %s376
        // Predicated region
        $region45: #{tpu_custom_call.1} parent=27 // pred_check
          %p378 = pneg %p121
        $region46: #{tpu_custom_call.1} parent=27 // pred_check_branch
          %380 = sbr.rel (%p378) target = $region48
        $region47: #{tpu_custom_call.1} parent=27 // pred_region
          %s382 = ssub.s32 16, 16
          %383 = vsyncadd %s375, %s382
          %s384 = sadd.s32 %s28, %s27
          %s385 = smul.addr %s384, 16
          %s386 = scalar_lea.hbm %s2, %s385
          %s388 = sshll.u32 %s377, 4
          %s389 = int_to_ptr.vmem [resolvable:$true] %s388
          %391 = dma.vmem_to_hbm [thread:$0]  %s389, 16, %s386, %s375
        $region48: #{tpu_custom_call.1} parent=27 // pred_fallthru
          _
      $region28: #{tpu_custom_call.1} parent=5 // pred_fallthru
        _
      %p392 = scmp.le.s32.totalorder 2, %s17
      // Predicated region
      $region49: #{tpu_custom_call.1} parent=5 // pred_check
        %p393 = pneg %p392
      $region50: #{tpu_custom_call.1} parent=5 // pred_check_branch
        %395 = sbr.rel (%p393) target = $region52
      $region51: #{tpu_custom_call.1} parent=5 // pred_region
        %s396 = ssub.s32 %s17, 2
        // Predicated region
        $region53: #{tpu_custom_call.1} parent=51 // pred_check
          %p397 = pneg %p127
        $region54: #{tpu_custom_call.1} parent=51 // pred_check_branch
          %399 = sbr.rel (%p397) target = $region56
        $region55: #{tpu_custom_call.1} parent=51 // pred_region
          %s400 = sand.u32 %s112, 1
          %s401 = scalar_lea.sflag [#allocation5], %s400
          %s402 = sand.u32 %s112, 1
          %s403 = scalar_lea.vmem [#allocation8], %s402
          %404 = dma.done %s401, 16
        $region56: #{tpu_custom_call.1} parent=51 // pred_fallthru
          _
      $region52: #{tpu_custom_call.1} parent=5 // pred_fallthru
        _
    $region6: #{tpu_custom_call.1} parent=1 // loop_footer
      %s21 = sadd.s32 1, %s17
    $region7: #{tpu_custom_call.1} parent=1 // loop_footer_branch
      %16 = sbr.rel target = $region3
    $region8: #{tpu_custom_call.1} parent=1 // loop_exit
      _
    %405 = vsyncpa [#allocation4], 1
    %s406 = scalar_lea.sflag [#allocation4], 1
    %407 = vsyncpa %s406, 1
    %408 = vsyncpa [#allocation7], 1
    %s409 = scalar_lea.sflag [#allocation7], 1
    %410 = vsyncpa %s409, 1
    %411 = vsyncpa [#allocation5], 1
    %s412 = scalar_lea.sflag [#allocation5], 1
    %413 = vsyncpa %s412, 1

</llo_original>
